<compile_context>
chip_gen: v7x
topology: tpu7x:2x2x1
jax: 0.10.0
libtpu: 0.0.40
codegen_flags: <defaults>
</compile_context>

<pallas_src>
import functools

import jax
import jax.numpy as jnp
from jax.experimental import pallas as pl
from jax.experimental.pallas import tpu as pltpu

_ONE_SIXTH = float(1.0 / 6.0)


def _h_swish_kernel(x_ref, o_ref):
    # Upcast to f32: free for a memory-bound kernel, keeps bf16 inputs close
    # to the f32 reference. The multiply by 1/6 avoids a per-element divide.
    x = x_ref[...].astype(jnp.float32)
    y = x * (jnp.clip(x + 3.0, 0.0, 6.0) * _ONE_SIXTH)
    o_ref[...] = y.astype(o_ref.dtype)


# Lane widths to try, widest first (lane-dense slabs -> unmasked stores, wide DMAs).
_LANE_CANDIDATES = (4096, 2048, 1024, 512, 256, 128)

# Below this many bytes a single full-array block wins (pipeline overlap and
# megacore sharding buy nothing for tiny tensors).
_MIN_SPLIT_BYTES = 256 * 1024


def _sublane_multiple(dtype) -> int:
    """Dtype-correct sublane packing: (8,128) f32, (16,128) bf16, (32,128) i8."""
    itemsize = jnp.dtype(dtype).itemsize
    return {4: 8, 2: 16, 1: 32}.get(itemsize, 8)


@functools.lru_cache(maxsize=1)
def _target_block_bytes() -> int:
    """Per-generation block-byte budget.

    In + out, double-buffered => VMEM ~= 4 * block_bytes:
      v5e : 2 MiB blocks ->  8 MiB, under the 16 MiB scoped default.
      v6e : 4 MiB blocks -> 16 MiB, under the 32 MiB scoped default.
      v7x : 4 MiB blocks -> 16 MiB, under the 32 MiB scoped / 64 MiB physical.
    """
    try:
        kind = jax.devices()[0].device_kind.lower()
    except Exception:
        return 2 * 1024 * 1024
    if "v6" in kind or "7" in kind:
        return 4 * 1024 * 1024
    # v5e / v5 lite / v4 / unknown: conservative default.
    return 2 * 1024 * 1024


def _choose_tile_rows(rows: int, lanes: int, itemsize: int, sub: int) -> int:
    total_bytes = rows * lanes * itemsize
    if total_bytes <= _MIN_SPLIT_BYTES or rows < 2 * sub:
        # Tiny input: one full-array block (a full-extent block shape is always
        # legal even when `rows` is not a multiple of the sublane pack).
        return rows
    block_bytes = _target_block_bytes()
    budget_rows = max(sub, (block_bytes // (lanes * itemsize)) // sub * sub)
    # Guarantee >= min_steps grid steps: overlap write-back of block i with the
    # fetch of block i+1 and let v7x's two TensorCores split the grid.
    min_steps = 4 if rows >= 4 * sub else 2
    cap_rows = max(sub, (rows // min_steps) // sub * sub)
    return min(budget_rows, cap_rows)


def h_swish_ref(x: jax.Array) -> jax.Array:
    """Pure-jnp reference (matches the PyTorch module)."""
    return x * (jnp.clip(x + 3.0, 0.0, 6.0) / 6.0)


def h_swish(x: jax.Array) -> jax.Array:
    """Elementwise h_swish; accepts any shape, e.g. NCHW (N, C, H, W)."""
    orig_shape = x.shape
    orig_dtype = x.dtype
    total = x.size
    if total == 0:
        return x

    # Ragged sizes (not a multiple of 128 lanes) or non-float dtypes: the fused
    # pure-jnp expression is already one HBM read + one write; a pad + kernel +
    # slice round trip would ~3x that traffic for an HBM-bound op.
    if total % 128 != 0 or not jnp.issubdtype(orig_dtype, jnp.floating):
        return h_swish_ref(x).astype(orig_dtype)

    sub = _sublane_multiple(orig_dtype)
    itemsize = jnp.dtype(orig_dtype).itemsize

    # Widest lane count that divides the flat size exactly -> zero-copy reshape.
    lanes = next(c for c in _LANE_CANDIDATES if total % c == 0)
    rows = total // lanes
    x2d = jnp.ravel(x).reshape(rows, lanes)

    tile_rows = _choose_tile_rows(rows, lanes, itemsize, sub)
    grid = (pl.cdiv(rows, tile_rows),)  # ragged last block handled by Pallas

    out2d = pl.pallas_call(
        _h_swish_kernel,
        out_shape=jax.ShapeDtypeStruct((rows, lanes), orig_dtype),
        grid_spec=pltpu.PrefetchScalarGridSpec(
            num_scalar_prefetch=0,
            grid=grid,
            in_specs=[pl.BlockSpec((tile_rows, lanes), lambda i: (i, 0))],
            out_specs=pl.BlockSpec((tile_rows, lanes), lambda i: (i, 0)),
        ),
        compiler_params=pltpu.CompilerParams(
            dimension_semantics=("parallel",),
        ),
    )(x2d)

    return out2d.reshape(orig_shape)


if __name__ == "__main__":
    key = jax.random.PRNGKey(0)

    # Main NCHW test (zero-copy lane-dense path; single block since it's tiny).
    x = jax.random.normal(key, (2, 4, 16, 16), dtype=jnp.float32) * 4.0
    out = jax.block_until_ready(h_swish(x))
    assert out.shape == x.shape and out.dtype == x.dtype
    assert jnp.allclose(out, h_swish_ref(x), atol=1e-5, rtol=1e-5)

    # Multi-block test (512 KiB -> >= 4 grid steps, exercises the pipelined path).
    x_m = jax.random.normal(jax.random.PRNGKey(3), (4, 32, 32, 32), dtype=jnp.float32) * 4.0
    out_m = jax.block_until_ready(h_swish(x_m))
    assert out_m.shape == x_m.shape
    assert jnp.allclose(out_m, h_swish_ref(x_m), atol=1e-5, rtol=1e-5)

    # Ragged-size test (3*5*7*7 = 735 not a multiple of 128 -> fused jnp fallback).
    x_r = jax.random.normal(jax.random.PRNGKey(1), (3, 5, 7, 7), dtype=jnp.float32) * 4.0
    out_r = jax.block_until_ready(h_swish(x_r))
    assert out_r.shape == x_r.shape
    assert jnp.allclose(out_r, h_swish_ref(x_r), atol=1e-5, rtol=1e-5)

    # bf16 test (kernel computes in f32 internally, casts at the store).
    x_b = (jax.random.normal(jax.random.PRNGKey(2), (2, 4, 16, 16)) * 4.0).astype(jnp.bfloat16)
    out_b = jax.block_until_ready(h_swish(x_b))
    assert out_b.dtype == jnp.bfloat16
    ref_b = h_swish_ref(x_b.astype(jnp.float32))
    assert jnp.allclose(out_b.astype(jnp.float32), ref_b, atol=2e-2, rtol=2e-2)

    print("KERNEL_OK")
</pallas_src>

<mosaic_0001>
module attributes {stable_mosaic.version = 11 : i64} {
  func.func @_h_swish_kernel(%arg0: i32, %arg1: memref<1x2048xf32, #tpu.memory_space<vmem>>, %arg2: memref<1x2048xf32, #tpu.memory_space<vmem>>) attributes {dimension_semantics = [#tpu.dimension_semantics<parallel>], iteration_bounds = array<i64: 1>, scalar_prefetch = 0 : i64, scratch_operands = 0 : i64, tpu.core_type = #tpu.core_type<tc>, window_params = [{transform_indices = @transform_0, window_bounds = array<i64: 1, 2048>}, {transform_indices = @transform_1, window_bounds = array<i64: 1, 2048>}]} {
    %c0 = arith.constant 0 : index
    %c0_0 = arith.constant 0 : index
    %0 = vector.load %arg1[%c0, %c0_0] : memref<1x2048xf32, #tpu.memory_space<vmem>>, vector<1x2048xf32>
    %cst = arith.constant 3.000000e+00 : f32
    %1 = vector.broadcast %cst : f32 to vector<1x2048xf32>
    %2 = arith.addf %0, %1 : vector<1x2048xf32>
    %cst_1 = arith.constant 0.000000e+00 : f32
    %cst_2 = arith.constant 6.000000e+00 : f32
    %3 = vector.broadcast %cst_1 : f32 to vector<1x2048xf32>
    %4 = arith.maximumf %3, %2 : vector<1x2048xf32>
    %5 = vector.broadcast %cst_2 : f32 to vector<1x2048xf32>
    %6 = arith.minimumf %5, %4 : vector<1x2048xf32>
    %cst_3 = arith.constant 0.166666672 : f32
    %7 = vector.broadcast %cst_3 : f32 to vector<1x2048xf32>
    %8 = arith.mulf %6, %7 : vector<1x2048xf32>
    %9 = arith.mulf %0, %8 : vector<1x2048xf32>
    %c0_4 = arith.constant 0 : index
    %c0_5 = arith.constant 0 : index
    %10 = vector.load %arg2[%c0_4, %c0_5] : memref<1x2048xf32, #tpu.memory_space<vmem>>, vector<1x2048xf32>
    tpu.vector_store %arg2[%c0_4, %c0_5], %9 {strides = array<i32>} : memref<1x2048xf32, #tpu.memory_space<vmem>>, vector<1x2048xf32>,
    return
  }
  func.func @transform_0(%arg0: i32) -> (i32, i32) {
    %c0_i32 = arith.constant 0 : i32
    %c0_i32_0 = arith.constant 0 : i32
    return %arg0, %c0_i32 : i32, i32
  }
  func.func @transform_1(%arg0: i32) -> (i32, i32) {
    %c0_i32 = arith.constant 0 : i32
    %c0_i32_0 = arith.constant 0 : i32
    return %arg0, %c0_i32 : i32, i32
  }
}

</mosaic_0001>

<llo_original>
// kernel: tpu_custom_call.1
$region0: #{tpu_custom_call.1}
  #allocation0 [shape = 'u32[]', space=smem, size = 0x4, offset = 0x4, fixed_abs, tag = 'smem constant byte address 0x4 - core index']
  #allocation1 [shape = 'u32[144,128]{1,0:T(1,128)}', space=vmem, size = 0x12000, scoped, tag = 'internal scratch']
  %s0 = inlined_call_operand.hbm [shape: f32[1,2048], index: 0, kind: input, shape index: {}]
  %s1 = inlined_call_operand.hbm [shape: f32[1,2048], index: 1, kind: output, shape index: {}]
  %s2 = sld [smem:[#allocation0]]
  $region18: #{tpu_custom_call.1} parent=0
    _
  %s4 = ssub.s32 1, %s2
  %s5 = scalar_select 0, %s4, %s2
  $region1: #{tpu_custom_call.1} parent=0
    #allocation2 [shape = 'u8[8192]{0}', space=vmem, size = 0x2000, scoped, tag = 'input window, operand 0, single buffered']
    #allocation3 [shape = 's32[1]{0}', space=sflag, size = 0x4, scoped, tag = 'scoped memory for tpu_custom_call.1']
    #allocation4 [shape = 's32[1]{0}', space=sflag, size = 0x4, scoped, tag = 'scoped memory for tpu_custom_call.1']
    #allocation5 [shape = 'u8[8192]{0}', space=vmem, size = 0x2000, scoped, tag = 'output window, operand 0, single buffered']
    %6 = vsyncpa [#allocation3], 0
    %7 = vsyncpa [#allocation4], 0
    // Predicated region
    $region2: #{tpu_custom_call.1} parent=1 // pred_check
      _
    $region3: #{tpu_custom_call.1} parent=1 // pred_check_branch
      %9 = sbr.rel (0) target = $region5
    $region4: #{tpu_custom_call.1} parent=1 // pred_region
      %s11 = ssub.s32 256, 256
      %12 = vsyncadd [#allocation3], %s11
      %s14 = sshll.u32 [#allocation2], 4
      %s15 = int_to_ptr.vmem [resolvable:$true] %s14
      %17 = dma.hbm_to_vmem [thread:$0]  %s0, 256, %s15, [#allocation3]
    $region5: #{tpu_custom_call.1} parent=1 // pred_fallthru
      _
    // Predicated region
    $region6: #{tpu_custom_call.1} parent=1 // pred_check
      _
    $region7: #{tpu_custom_call.1} parent=1 // pred_check_branch
      %19 = sbr.rel (0) target = $region9
    $region8: #{tpu_custom_call.1} parent=1 // pred_region
      %20 = dma.done [#allocation3], 256
    $region9: #{tpu_custom_call.1} parent=1 // pred_fallthru
      _
    %v21 = vld [vmem:[#allocation2] sm:$0xff]
    %v22 = vld [vmem:[#allocation2 + $0x8] sm:$0xff]
    %v23 = vadd.f32 %v21, 3.0
    %v24 = vadd.f32 %v22, 3.0
    %v25 = vmax.f32 %v23, 0.0
    %v26 = vmax.f32 %v24, 0.0
    %v27 = vmin.f32 %v25, 6.0
    %v28 = vmin.f32 %v26, 6.0
    %v29 = vmul.f32 %v27, 0.16666667
    %v30 = vmul.f32 %v28, 0.16666667
    %v31 = vmul.f32 %v21, %v29
    %v32 = vmul.f32 %v22, %v30
    %33 = vst [vmem:[#allocation5] sm:$0xff] %v31
    %34 = vst [vmem:[#allocation5 + $0x8] sm:$0xff] %v32
    // Predicated region
    $region10: #{tpu_custom_call.1} parent=1 // pred_check
      _
    $region11: #{tpu_custom_call.1} parent=1 // pred_check_branch
      %36 = sbr.rel (0) target = $region13
    $region12: #{tpu_custom_call.1} parent=1 // pred_region
      %s38 = ssub.s32 256, 256
      %39 = vsyncadd [#allocation4], %s38
      %s41 = sshll.u32 [#allocation5], 4
      %s42 = int_to_ptr.vmem [resolvable:$true] %s41
      %44 = dma.vmem_to_hbm [thread:$0]  %s42, 256, %s1, [#allocation4]
    $region13: #{tpu_custom_call.1} parent=1 // pred_fallthru
      _
    // Predicated region
    $region14: #{tpu_custom_call.1} parent=1 // pred_check
      _
    $region15: #{tpu_custom_call.1} parent=1 // pred_check_branch
      %46 = sbr.rel (0) target = $region17
    $region16: #{tpu_custom_call.1} parent=1 // pred_region
      %47 = dma.done [#allocation4], 256
    $region17: #{tpu_custom_call.1} parent=1 // pred_fallthru
      _
    %48 = vsyncpa [#allocation3], 1
    %49 = vsyncpa [#allocation4], 1

</llo_original>
